<compile_context>
chip_gen: v7x
topology: tpu7x:2x2x1
jax: 0.10.0
libtpu: 0.0.40
codegen_flags: <defaults>
</compile_context>

<pallas_src>
import math
import jax
import jax.numpy as jnp
from jax.experimental import pallas as pl
from jax.experimental.pallas import tpu as pltpu

# ----------------------------- configuration ---------------------------------
B, S, E = 2, 8, 32          # batch, seq, embed_size
H = 4                       # num_heads
D = E // H                  # depth per head
F = 64                      # ff_hidden_dim
LN_EPS = 1e-5
N = B * S                   # flattened token count

# packed weight-slab lane offsets (all multiples of 128 -> aligned tile loads)
QKV_OFF, WO_OFF, W1_OFF, W2T_OFF = 0, 128, 256, 384
W_SLAB_W = 448              # total lane width of the bf16 weight slab
VEC_ROWS = 8                # rows of the f32 bias/LayerNorm vector slab


# ------------------------------- kernel ---------------------------------------
def transformer_block_kernel(x_ref, w_ref, vec_ref, mask_ref, o_ref):
    # x_ref    : (N, E)        f32   flattened tokens
    # w_ref    : (E, W_SLAB_W) bf16  Wqkv | Wo | W1 | W2^T  (Wq,bq pre-scaled)
    # vec_ref  : (8, 3E)       f32   bqkv | bo | g1 | be1 | b1 | b2 | g2 | be2
    # mask_ref : (N, N)        f32   additive block-diagonal mask (0 / -1e30)
    # o_ref    : (N, E)        f32
    x = x_ref[...]
    xb = x.astype(jnp.bfloat16)

    # --- static slices of the packed slabs (all lane-aligned / offset-0) ------
    wqkv = w_ref[:, QKV_OFF:QKV_OFF + 3 * E]          # (E, 3E) bf16
    wo = w_ref[:, WO_OFF:WO_OFF + E]                  # (E, E)  bf16
    w1 = w_ref[:, W1_OFF:W1_OFF + F]                  # (E, F)  bf16
    w2t = w_ref[:, W2T_OFF:W2T_OFF + F]               # (E, F)  bf16 == W2.T

    bqkv = vec_ref[0:1, 0:3 * E]                      # (1, 3E) f32 (bq pre-scaled)
    bo = vec_ref[1:2, 0:E]
    g1 = vec_ref[2:3, 0:E]
    be1 = vec_ref[3:4, 0:E]
    b1 = vec_ref[4:5, 0:F]
    b2 = vec_ref[5:6, 0:E]
    g2 = vec_ref[6:7, 0:E]
    be2 = vec_ref[7:8, 0:E]

    # --- fused QKV projection: one MXU push, f32 accumulate -------------------
    qkv = jnp.dot(xb, wqkv, preferred_element_type=jnp.float32) + bqkv   # (N, 3E)
    qkvb = qkv.astype(jnp.bfloat16)

    mask = mask_ref[...]                              # (N, N) additive mask

    # --- per-head attention; head outputs stay as values (no scratch) ---------
    heads = []
    for h in range(H):
        lo, hi = h * D, (h + 1) * D
        q_h = qkvb[:, lo:hi]                          # (N, D) bf16 (scaled)
        k_h = qkvb[:, E + lo:E + hi]
        v_h = qkvb[:, 2 * E + lo:2 * E + hi]
        s = jax.lax.dot_general(                      # (N, N) f32
            q_h, k_h, (((1,), (1,)), ((), ())),
            preferred_element_type=jnp.float32)
        s = s + mask
        s = s - jnp.max(s, axis=-1, keepdims=True)
        p = jnp.exp(s)
        p = p * pl.reciprocal(jnp.sum(p, axis=-1, keepdims=True), approx=True)
        heads.append(jnp.dot(p.astype(jnp.bfloat16), v_h,
                             preferred_element_type=jnp.float32))        # (N, D)
    attn = jnp.concatenate(heads, axis=-1)            # (N, E) f32

    # --- output projection + residual + LayerNorm1 (f32 elementwise) ----------
    attn_out = jnp.dot(attn.astype(jnp.bfloat16), wo,
                       preferred_element_type=jnp.float32) + bo
    h1 = x + attn_out                                 # dropout == identity
    mu1 = jnp.mean(h1, axis=-1, keepdims=True)
    var1 = jnp.mean((h1 - mu1) ** 2, axis=-1, keepdims=True)
    n1 = (h1 - mu1) * jax.lax.rsqrt(var1 + LN_EPS) * g1 + be1

    # --- feed-forward: Linear -> ReLU -> Linear (W2 packed transposed) --------
    f = jnp.dot(n1.astype(jnp.bfloat16), w1,
                preferred_element_type=jnp.float32) + b1
    f = jnp.maximum(f, 0.0)
    ff = jax.lax.dot_general(                         # contracts minor dims: f @ W2
        f.astype(jnp.bfloat16), w2t, (((1,), (1,)), ((), ())),
        preferred_element_type=jnp.float32) + b2

    # --- residual + LayerNorm2 -------------------------------------------------
    h2 = n1 + ff                                      # dropout == identity
    mu2 = jnp.mean(h2, axis=-1, keepdims=True)
    var2 = jnp.mean((h2 - mu2) ** 2, axis=-1, keepdims=True)
    o_ref[...] = (h2 - mu2) * jax.lax.rsqrt(var2 + LN_EPS) * g2 + be2


# ----------------------- one-time parameter packing ----------------------------
def pack_params(params):
    """Fuse/pack the f32 params into the kernel's 3 constant inputs (done once)."""
    scale = 1.0 / math.sqrt(D)

    w_slab = jnp.zeros((E, W_SLAB_W), jnp.float32)
    wqkv = jnp.concatenate(
        [params["wq"] * scale, params["wk"], params["wv"]], axis=1)      # (E, 3E)
    w_slab = w_slab.at[:, QKV_OFF:QKV_OFF + 3 * E].set(wqkv)
    w_slab = w_slab.at[:, WO_OFF:WO_OFF + E].set(params["wo"])
    w_slab = w_slab.at[:, W1_OFF:W1_OFF + F].set(params["w1"])
    w_slab = w_slab.at[:, W2T_OFF:W2T_OFF + F].set(params["w2"].T)
    w_slab = w_slab.astype(jnp.bfloat16)              # bf16 cast hoisted here

    vec = jnp.zeros((VEC_ROWS, 3 * E), jnp.float32)
    bqkv = jnp.concatenate(
        [params["bq"] * scale, params["bk"], params["bv"]], axis=1)      # (1, 3E)
    vec = vec.at[0, 0:3 * E].set(bqkv[0])
    vec = vec.at[1, 0:E].set(params["bo"][0])
    vec = vec.at[2, 0:E].set(params["g1"][0])
    vec = vec.at[3, 0:E].set(params["be1"][0])
    vec = vec.at[4, 0:F].set(params["b1"][0])
    vec = vec.at[5, 0:E].set(params["b2"][0])
    vec = vec.at[6, 0:E].set(params["g2"][0])
    vec = vec.at[7, 0:E].set(params["be2"][0])

    # additive "same sequence" block-diagonal mask (precomputed, per review)
    row = jnp.arange(N, dtype=jnp.int32) // S
    mask = jnp.where(row[:, None] == row[None, :], 0.0, -1e30).astype(jnp.float32)

    return w_slab, vec, mask


# ------------------------------- wrapper --------------------------------------
def _transformer_block(x, w_slab, vec_slab, mask):
    x2 = x.reshape(N, E)                              # flatten tokens in XLA land

    flops = (2 * N * E * (3 * E)                      # fused QKV projection
             + H * 2 * (2 * N * N * D)                # scores + probs @ V
             + 2 * N * E * E                          # output projection
             + 2 * (2 * N * E * F))                   # FFN
    transcendentals = H * N * N + H * N + 2 * N       # exp + recip + rsqrt
    bytes_accessed = (x2.size * 4 + w_slab.size * 2 + vec_slab.size * 4
                      + mask.size * 4 + N * E * 4)

    vmem = lambda: pl.BlockSpec(memory_space=pltpu.MemorySpace.VMEM)
    out2 = pl.pallas_call(
        transformer_block_kernel,
        out_shape=jax.ShapeDtypeStruct((N, E), jnp.float32),
        in_specs=[vmem(), vmem(), vmem(), vmem()],
        out_specs=vmem(),
        cost_estimate=pl.CostEstimate(
            flops=flops,
            transcendentals=transcendentals,
            bytes_accessed=bytes_accessed),
    )(x2, w_slab, vec_slab, mask)
    return out2.reshape(B, S, E)


transformer_block = jax.jit(_transformer_block)


# ------------------------- pure-JAX reference (sanity) -------------------------
def transformer_block_ref(x, p):
    q = x @ p["wq"] + p["bq"]
    k = x @ p["wk"] + p["bk"]
    v = x @ p["wv"] + p["bv"]
    qh = q.reshape(B, S, H, D).transpose(0, 2, 1, 3)
    kh = k.reshape(B, S, H, D).transpose(0, 2, 1, 3)
    vh = v.reshape(B, S, H, D).transpose(0, 2, 1, 3)
    scores = jnp.einsum("bhqd,bhkd->bhqk", qh, kh) / math.sqrt(D)
    w = jax.nn.softmax(scores, axis=-1)
    o = jnp.einsum("bhqk,bhkd->bhqd", w, vh).transpose(0, 2, 1, 3).reshape(B, S, E)
    attn = o @ p["wo"] + p["bo"]

    def ln(h, g, b):
        mu = jnp.mean(h, axis=-1, keepdims=True)
        var = jnp.mean((h - mu) ** 2, axis=-1, keepdims=True)
        return (h - mu) / jnp.sqrt(var + LN_EPS) * g + b

    n1 = ln(x + attn, p["g1"], p["be1"])
    ff = jnp.maximum(n1 @ p["w1"] + p["b1"], 0.0) @ p["w2"] + p["b2"]
    return ln(n1 + ff, p["g2"], p["be2"])


# ------------------------------ param init ------------------------------------
def init_params(key):
    ks = jax.random.split(key, 12)
    s = 0.02
    return {
        "wq": jax.random.normal(ks[0], (E, E), jnp.float32) * s,
        "bq": jax.random.normal(ks[1], (1, E), jnp.float32) * s,
        "wk": jax.random.normal(ks[2], (E, E), jnp.float32) * s,
        "bk": jax.random.normal(ks[3], (1, E), jnp.float32) * s,
        "wv": jax.random.normal(ks[4], (E, E), jnp.float32) * s,
        "bv": jax.random.normal(ks[5], (1, E), jnp.float32) * s,
        "wo": jax.random.normal(ks[6], (E, E), jnp.float32) * s,
        "bo": jax.random.normal(ks[7], (1, E), jnp.float32) * s,
        "g1": jnp.ones((1, E), jnp.float32),
        "be1": jnp.zeros((1, E), jnp.float32),
        "w1": jax.random.normal(ks[8], (E, F), jnp.float32) * s,
        "b1": jax.random.normal(ks[9], (1, F), jnp.float32) * s,
        "w2": jax.random.normal(ks[10], (F, E), jnp.float32) * s,
        "b2": jax.random.normal(ks[11], (1, E), jnp.float32) * s,
        "g2": jnp.ones((1, E), jnp.float32),
        "be2": jnp.zeros((1, E), jnp.float32),
    }


if __name__ == "__main__":
    key = jax.random.PRNGKey(0)
    kx, kp = jax.random.split(key)
    x = jax.random.normal(kx, (B, S, E), jnp.float32)
    params = init_params(kp)

    packed = pack_params(params)                      # one-time: fuse, cast, mask
    packed = jax.tree_util.tree_map(jax.block_until_ready, packed)

    out = transformer_block(x, *packed)
    out = jax.block_until_ready(out)

    ref = transformer_block_ref(x, params)
    assert out.shape == (B, S, E)
    # bf16 MXU operands + approx reciprocal loosen agreement vs the f32 reference.
    assert jnp.allclose(out, ref, atol=2e-2, rtol=2e-2), "mismatch vs JAX reference"

    print("KERNEL_OK")
</pallas_src>

<mosaic_0001>
module attributes {stable_mosaic.version = 11 : i64} {
  func.func @transformer_block_kernel(%arg0: memref<16x32xf32, #tpu.memory_space<vmem>>, %arg1: memref<32x448xbf16, #tpu.memory_space<vmem>>, %arg2: memref<8x96xf32, #tpu.memory_space<vmem>>, %arg3: memref<16x16xf32, #tpu.memory_space<vmem>>, %arg4: memref<16x32xf32, #tpu.memory_space<vmem>>) attributes {dimension_semantics = [], scalar_prefetch = 0 : i64, scratch_operands = 0 : i64, tpu.core_type = #tpu.core_type<tc>} {
    %c0 = arith.constant 0 : index
    %c0_0 = arith.constant 0 : index
    %0 = vector.load %arg0[%c0, %c0_0] : memref<16x32xf32, #tpu.memory_space<vmem>>, vector<16x32xf32>
    %1 = arith.truncf %0 : vector<16x32xf32> to vector<16x32xbf16>
    %c0_1 = arith.constant 0 : index
    %c0_2 = arith.constant 0 : index
    %2 = vector.load %arg1[%c0_1, %c0_2] : memref<32x448xbf16, #tpu.memory_space<vmem>>, vector<32x96xbf16>
    %c0_3 = arith.constant 0 : index
    %c128 = arith.constant 128 : index
    %3 = vector.load %arg1[%c0_3, %c128] : memref<32x448xbf16, #tpu.memory_space<vmem>>, vector<32x32xbf16>
    %c0_4 = arith.constant 0 : index
    %c256 = arith.constant 256 : index
    %4 = vector.load %arg1[%c0_4, %c256] : memref<32x448xbf16, #tpu.memory_space<vmem>>, vector<32x64xbf16>
    %c0_5 = arith.constant 0 : index
    %c384 = arith.constant 384 : index
    %5 = vector.load %arg1[%c0_5, %c384] : memref<32x448xbf16, #tpu.memory_space<vmem>>, vector<32x64xbf16>
    %c0_6 = arith.constant 0 : index
    %c0_7 = arith.constant 0 : index
    %6 = vector.load %arg2[%c0_6, %c0_7] : memref<8x96xf32, #tpu.memory_space<vmem>>, vector<1x96xf32>
    %c1 = arith.constant 1 : index
    %c0_8 = arith.constant 0 : index
    %7 = vector.load %arg2[%c1, %c0_8] : memref<8x96xf32, #tpu.memory_space<vmem>>, vector<1x32xf32>
    %c2 = arith.constant 2 : index
    %c0_9 = arith.constant 0 : index
    %8 = vector.load %arg2[%c2, %c0_9] : memref<8x96xf32, #tpu.memory_space<vmem>>, vector<1x32xf32>
    %c3 = arith.constant 3 : index
    %c0_10 = arith.constant 0 : index
    %9 = vector.load %arg2[%c3, %c0_10] : memref<8x96xf32, #tpu.memory_space<vmem>>, vector<1x32xf32>
    %c4 = arith.constant 4 : index
    %c0_11 = arith.constant 0 : index
    %10 = vector.load %arg2[%c4, %c0_11] : memref<8x96xf32, #tpu.memory_space<vmem>>, vector<1x64xf32>
    %c5 = arith.constant 5 : index
    %c0_12 = arith.constant 0 : index
    %11 = vector.load %arg2[%c5, %c0_12] : memref<8x96xf32, #tpu.memory_space<vmem>>, vector<1x32xf32>
    %c6 = arith.constant 6 : index
    %c0_13 = arith.constant 0 : index
    %12 = vector.load %arg2[%c6, %c0_13] : memref<8x96xf32, #tpu.memory_space<vmem>>, vector<1x32xf32>
    %c7 = arith.constant 7 : index
    %c0_14 = arith.constant 0 : index
    %13 = vector.load %arg2[%c7, %c0_14] : memref<8x96xf32, #tpu.memory_space<vmem>>, vector<1x32xf32>
    %cst = arith.constant dense<0.000000e+00> : vector<16x96xf32>
    %14 = tpu.matmul %1, %2, %cst {dimension_numbers = #tpu.dot_dimension_numbers<[1], [0], [0], [1], [0, 0, 1, 1], [], []>} : vector<16x32xbf16>, vector<32x96xbf16>, vector<16x96xf32> -> vector<16x96xf32>
    %15 = vector.broadcast %6 : vector<1x96xf32> to vector<16x96xf32>
    %16 = arith.addf %14, %15 : vector<16x96xf32>
    %17 = arith.truncf %16 : vector<16x96xf32> to vector<16x96xbf16>
    %c0_15 = arith.constant 0 : index
    %c0_16 = arith.constant 0 : index
    %18 = vector.load %arg3[%c0_15, %c0_16] : memref<16x16xf32, #tpu.memory_space<vmem>>, vector<16x16xf32>
    %19 = vector.extract_strided_slice %17 {offsets = [0, 0], sizes = [16, 8], strides = [1, 1]} : vector<16x96xbf16> to vector<16x8xbf16>
    %20 = vector.extract_strided_slice %17 {offsets = [0, 32], sizes = [16, 8], strides = [1, 1]} : vector<16x96xbf16> to vector<16x8xbf16>
    %21 = vector.extract_strided_slice %17 {offsets = [0, 64], sizes = [16, 8], strides = [1, 1]} : vector<16x96xbf16> to vector<16x8xbf16>
    %cst_17 = arith.constant dense<0.000000e+00> : vector<16x16xf32>
    %22 = tpu.matmul %19, %20, %cst_17 {dimension_numbers = #tpu.dot_dimension_numbers<[1], [1], [0], [0], [0, 0, 1, 0], [], []>} : vector<16x8xbf16>, vector<16x8xbf16>, vector<16x16xf32> -> vector<16x16xf32>
    %23 = arith.addf %22, %18 : vector<16x16xf32>
    %cst_18 = arith.constant dense<0xFF800000> : vector<16xf32>
    %24 = vector.multi_reduction <maximumf>, %23, %cst_18 [1] : vector<16x16xf32> to vector<16xf32>
    %25 = vector.shape_cast %24 : vector<16xf32> to vector<16x1xf32>
    %26 = vector.broadcast %25 : vector<16x1xf32> to vector<16x16xf32>
    %27 = arith.subf %23, %26 : vector<16x16xf32>
    %28 = math.exp %27 : vector<16x16xf32>
    %cst_19 = arith.constant dense<0.000000e+00> : vector<16xf32>
    %29 = vector.multi_reduction <add>, %28, %cst_19 [1] : vector<16x16xf32> to vector<16xf32>
    %30 = vector.shape_cast %29 : vector<16xf32> to vector<16x1xf32>
    %31 = tpu.reciprocal %30 {approx = true} : vector<16x1xf32> -> vector<16x1xf32>
    %32 = vector.broadcast %31 : vector<16x1xf32> to vector<16x16xf32>
    %33 = arith.mulf %28, %32 : vector<16x16xf32>
    %34 = arith.truncf %33 : vector<16x16xf32> to vector<16x16xbf16>
    %cst_20 = arith.constant dense<0.000000e+00> : vector<16x8xf32>
    %35 = tpu.matmul %34, %21, %cst_20 {dimension_numbers = #tpu.dot_dimension_numbers<[1], [0], [0], [1], [0, 0, 1, 1], [], []>} : vector<16x16xbf16>, vector<16x8xbf16>, vector<16x8xf32> -> vector<16x8xf32>
    %36 = vector.extract_strided_slice %17 {offsets = [0, 8], sizes = [16, 8], strides = [1, 1]} : vector<16x96xbf16> to vector<16x8xbf16>
    %37 = vector.extract_strided_slice %17 {offsets = [0, 40], sizes = [16, 8], strides = [1, 1]} : vector<16x96xbf16> to vector<16x8xbf16>
    %38 = vector.extract_strided_slice %17 {offsets = [0, 72], sizes = [16, 8], strides = [1, 1]} : vector<16x96xbf16> to vector<16x8xbf16>
    %cst_21 = arith.constant dense<0.000000e+00> : vector<16x16xf32>
    %39 = tpu.matmul %36, %37, %cst_21 {dimension_numbers = #tpu.dot_dimension_numbers<[1], [1], [0], [0], [0, 0, 1, 0], [], []>} : vector<16x8xbf16>, vector<16x8xbf16>, vector<16x16xf32> -> vector<16x16xf32>
    %40 = arith.addf %39, %18 : vector<16x16xf32>
    %cst_22 = arith.constant dense<0xFF800000> : vector<16xf32>
    %41 = vector.multi_reduction <maximumf>, %40, %cst_22 [1] : vector<16x16xf32> to vector<16xf32>
    %42 = vector.shape_cast %41 : vector<16xf32> to vector<16x1xf32>
    %43 = vector.broadcast %42 : vector<16x1xf32> to vector<16x16xf32>
    %44 = arith.subf %40, %43 : vector<16x16xf32>
    %45 = math.exp %44 : vector<16x16xf32>
    %cst_23 = arith.constant dense<0.000000e+00> : vector<16xf32>
    %46 = vector.multi_reduction <add>, %45, %cst_23 [1] : vector<16x16xf32> to vector<16xf32>
    %47 = vector.shape_cast %46 : vector<16xf32> to vector<16x1xf32>
    %48 = tpu.reciprocal %47 {approx = true} : vector<16x1xf32> -> vector<16x1xf32>
    %49 = vector.broadcast %48 : vector<16x1xf32> to vector<16x16xf32>
    %50 = arith.mulf %45, %49 : vector<16x16xf32>
    %51 = arith.truncf %50 : vector<16x16xf32> to vector<16x16xbf16>
    %cst_24 = arith.constant dense<0.000000e+00> : vector<16x8xf32>
    %52 = tpu.matmul %51, %38, %cst_24 {dimension_numbers = #tpu.dot_dimension_numbers<[1], [0], [0], [1], [0, 0, 1, 1], [], []>} : vector<16x16xbf16>, vector<16x8xbf16>, vector<16x8xf32> -> vector<16x8xf32>
    %53 = vector.extract_strided_slice %17 {offsets = [0, 16], sizes = [16, 8], strides = [1, 1]} : vector<16x96xbf16> to vector<16x8xbf16>
    %54 = vector.extract_strided_slice %17 {offsets = [0, 48], sizes = [16, 8], strides = [1, 1]} : vector<16x96xbf16> to vector<16x8xbf16>
    %55 = vector.extract_strided_slice %17 {offsets = [0, 80], sizes = [16, 8], strides = [1, 1]} : vector<16x96xbf16> to vector<16x8xbf16>
    %cst_25 = arith.constant dense<0.000000e+00> : vector<16x16xf32>
    %56 = tpu.matmul %53, %54, %cst_25 {dimension_numbers = #tpu.dot_dimension_numbers<[1], [1], [0], [0], [0, 0, 1, 0], [], []>} : vector<16x8xbf16>, vector<16x8xbf16>, vector<16x16xf32> -> vector<16x16xf32>
    %57 = arith.addf %56, %18 : vector<16x16xf32>
    %cst_26 = arith.constant dense<0xFF800000> : vector<16xf32>
    %58 = vector.multi_reduction <maximumf>, %57, %cst_26 [1] : vector<16x16xf32> to vector<16xf32>
    %59 = vector.shape_cast %58 : vector<16xf32> to vector<16x1xf32>
    %60 = vector.broadcast %59 : vector<16x1xf32> to vector<16x16xf32>
    %61 = arith.subf %57, %60 : vector<16x16xf32>
    %62 = math.exp %61 : vector<16x16xf32>
    %cst_27 = arith.constant dense<0.000000e+00> : vector<16xf32>
    %63 = vector.multi_reduction <add>, %62, %cst_27 [1] : vector<16x16xf32> to vector<16xf32>
    %64 = vector.shape_cast %63 : vector<16xf32> to vector<16x1xf32>
    %65 = tpu.reciprocal %64 {approx = true} : vector<16x1xf32> -> vector<16x1xf32>
    %66 = vector.broadcast %65 : vector<16x1xf32> to vector<16x16xf32>
    %67 = arith.mulf %62, %66 : vector<16x16xf32>
    %68 = arith.truncf %67 : vector<16x16xf32> to vector<16x16xbf16>
    %cst_28 = arith.constant dense<0.000000e+00> : vector<16x8xf32>
    %69 = tpu.matmul %68, %55, %cst_28 {dimension_numbers = #tpu.dot_dimension_numbers<[1], [0], [0], [1], [0, 0, 1, 1], [], []>} : vector<16x16xbf16>, vector<16x8xbf16>, vector<16x8xf32> -> vector<16x8xf32>
    %70 = vector.extract_strided_slice %17 {offsets = [0, 24], sizes = [16, 8], strides = [1, 1]} : vector<16x96xbf16> to vector<16x8xbf16>
    %71 = vector.extract_strided_slice %17 {offsets = [0, 56], sizes = [16, 8], strides = [1, 1]} : vector<16x96xbf16> to vector<16x8xbf16>
    %72 = vector.extract_strided_slice %17 {offsets = [0, 88], sizes = [16, 8], strides = [1, 1]} : vector<16x96xbf16> to vector<16x8xbf16>
    %cst_29 = arith.constant dense<0.000000e+00> : vector<16x16xf32>
    %73 = tpu.matmul %70, %71, %cst_29 {dimension_numbers = #tpu.dot_dimension_numbers<[1], [1], [0], [0], [0, 0, 1, 0], [], []>} : vector<16x8xbf16>, vector<16x8xbf16>, vector<16x16xf32> -> vector<16x16xf32>
    %74 = arith.addf %73, %18 : vector<16x16xf32>
    %cst_30 = arith.constant dense<0xFF800000> : vector<16xf32>
    %75 = vector.multi_reduction <maximumf>, %74, %cst_30 [1] : vector<16x16xf32> to vector<16xf32>
    %76 = vector.shape_cast %75 : vector<16xf32> to vector<16x1xf32>
    %77 = vector.broadcast %76 : vector<16x1xf32> to vector<16x16xf32>
    %78 = arith.subf %74, %77 : vector<16x16xf32>
    %79 = math.exp %78 : vector<16x16xf32>
    %cst_31 = arith.constant dense<0.000000e+00> : vector<16xf32>
    %80 = vector.multi_reduction <add>, %79, %cst_31 [1] : vector<16x16xf32> to vector<16xf32>
    %81 = vector.shape_cast %80 : vector<16xf32> to vector<16x1xf32>
    %82 = tpu.reciprocal %81 {approx = true} : vector<16x1xf32> -> vector<16x1xf32>
    %83 = vector.broadcast %82 : vector<16x1xf32> to vector<16x16xf32>
    %84 = arith.mulf %79, %83 : vector<16x16xf32>
    %85 = arith.truncf %84 : vector<16x16xf32> to vector<16x16xbf16>
    %cst_32 = arith.constant dense<0.000000e+00> : vector<16x8xf32>
    %86 = tpu.matmul %85, %72, %cst_32 {dimension_numbers = #tpu.dot_dimension_numbers<[1], [0], [0], [1], [0, 0, 1, 1], [], []>} : vector<16x16xbf16>, vector<16x8xbf16>, vector<16x8xf32> -> vector<16x8xf32>
    %87 = tpu.concatenate %35, %52, %69, %86 in 1 : vector<16x8xf32>, vector<16x8xf32>, vector<16x8xf32>, vector<16x8xf32> -> vector<16x32xf32>
    %88 = arith.truncf %87 : vector<16x32xf32> to vector<16x32xbf16>
    %cst_33 = arith.constant dense<0.000000e+00> : vector<16x32xf32>
    %89 = tpu.matmul %88, %3, %cst_33 {dimension_numbers = #tpu.dot_dimension_numbers<[1], [0], [0], [1], [0, 0, 1, 1], [], []>} : vector<16x32xbf16>, vector<32x32xbf16>, vector<16x32xf32> -> vector<16x32xf32>
    %90 = vector.broadcast %7 : vector<1x32xf32> to vector<16x32xf32>
    %91 = arith.addf %89, %90 : vector<16x32xf32>
    %92 = arith.addf %0, %91 : vector<16x32xf32>
    %cst_34 = arith.constant dense<0.000000e+00> : vector<16xf32>
    %93 = vector.multi_reduction <add>, %92, %cst_34 [1] : vector<16x32xf32> to vector<16xf32>
    %94 = vector.shape_cast %93 : vector<16xf32> to vector<16x1xf32>
    %cst_35 = arith.constant 3.200000e+01 : f32
    %95 = vector.broadcast %cst_35 : f32 to vector<16x1xf32>
    %96 = arith.divf %94, %95 : vector<16x1xf32>
    %97 = vector.broadcast %96 : vector<16x1xf32> to vector<16x32xf32>
    %98 = arith.subf %92, %97 : vector<16x32xf32>
    %99 = arith.mulf %98, %98 : vector<16x32xf32>
    %cst_36 = arith.constant dense<0.000000e+00> : vector<16xf32>
    %100 = vector.multi_reduction <add>, %99, %cst_36 [1] : vector<16x32xf32> to vector<16xf32>
    %101 = vector.shape_cast %100 : vector<16xf32> to vector<16x1xf32>
    %cst_37 = arith.constant 3.200000e+01 : f32
    %102 = vector.broadcast %cst_37 : f32 to vector<16x1xf32>
    %103 = arith.divf %101, %102 : vector<16x1xf32>
    %104 = vector.broadcast %96 : vector<16x1xf32> to vector<16x32xf32>
    %105 = arith.subf %92, %104 : vector<16x32xf32>
    %cst_38 = arith.constant 9.99999974E-6 : f32
    %106 = vector.broadcast %cst_38 : f32 to vector<16x1xf32>
    %107 = arith.addf %103, %106 : vector<16x1xf32>
    %108 = math.rsqrt %107 : vector<16x1xf32>
    %109 = vector.broadcast %108 : vector<16x1xf32> to vector<16x32xf32>
    %110 = arith.mulf %105, %109 : vector<16x32xf32>
    %111 = vector.broadcast %8 : vector<1x32xf32> to vector<16x32xf32>
    %112 = arith.mulf %110, %111 : vector<16x32xf32>
    %113 = vector.broadcast %9 : vector<1x32xf32> to vector<16x32xf32>
    %114 = arith.addf %112, %113 : vector<16x32xf32>
    %115 = arith.truncf %114 : vector<16x32xf32> to vector<16x32xbf16>
    %cst_39 = arith.constant dense<0.000000e+00> : vector<16x64xf32>
    %116 = tpu.matmul %115, %4, %cst_39 {dimension_numbers = #tpu.dot_dimension_numbers<[1], [0], [0], [1], [0, 0, 1, 1], [], []>} : vector<16x32xbf16>, vector<32x64xbf16>, vector<16x64xf32> -> vector<16x64xf32>
    %117 = vector.broadcast %10 : vector<1x64xf32> to vector<16x64xf32>
    %118 = arith.addf %116, %117 : vector<16x64xf32>
    %cst_40 = arith.constant 0.000000e+00 : f32
    %119 = vector.broadcast %cst_40 : f32 to vector<16x64xf32>
    %120 = arith.maximumf %118, %119 : vector<16x64xf32>
    %121 = arith.truncf %120 : vector<16x64xf32> to vector<16x64xbf16>
    %cst_41 = arith.constant dense<0.000000e+00> : vector<16x32xf32>
    %122 = tpu.matmul %121, %5, %cst_41 {dimension_numbers = #tpu.dot_dimension_numbers<[1], [1], [0], [0], [0, 0, 1, 0], [], []>} : vector<16x64xbf16>, vector<32x64xbf16>, vector<16x32xf32> -> vector<16x32xf32>
    %123 = vector.broadcast %11 : vector<1x32xf32> to vector<16x32xf32>
    %124 = arith.addf %122, %123 : vector<16x32xf32>
    %125 = arith.addf %114, %124 : vector<16x32xf32>
    %cst_42 = arith.constant dense<0.000000e+00> : vector<16xf32>
    %126 = vector.multi_reduction <add>, %125, %cst_42 [1] : vector<16x32xf32> to vector<16xf32>
    %127 = vector.shape_cast %126 : vector<16xf32> to vector<16x1xf32>
    %cst_43 = arith.constant 3.200000e+01 : f32
    %128 = vector.broadcast %cst_43 : f32 to vector<16x1xf32>
    %129 = arith.divf %127, %128 : vector<16x1xf32>
    %130 = vector.broadcast %129 : vector<16x1xf32> to vector<16x32xf32>
    %131 = arith.subf %125, %130 : vector<16x32xf32>
    %132 = arith.mulf %131, %131 : vector<16x32xf32>
    %cst_44 = arith.constant dense<0.000000e+00> : vector<16xf32>
    %133 = vector.multi_reduction <add>, %132, %cst_44 [1] : vector<16x32xf32> to vector<16xf32>
    %134 = vector.shape_cast %133 : vector<16xf32> to vector<16x1xf32>
    %cst_45 = arith.constant 3.200000e+01 : f32
    %135 = vector.broadcast %cst_45 : f32 to vector<16x1xf32>
    %136 = arith.divf %134, %135 : vector<16x1xf32>
    %137 = vector.broadcast %129 : vector<16x1xf32> to vector<16x32xf32>
    %138 = arith.subf %125, %137 : vector<16x32xf32>
    %cst_46 = arith.constant 9.99999974E-6 : f32
    %139 = vector.broadcast %cst_46 : f32 to vector<16x1xf32>
    %140 = arith.addf %136, %139 : vector<16x1xf32>
    %141 = math.rsqrt %140 : vector<16x1xf32>
    %142 = vector.broadcast %141 : vector<16x1xf32> to vector<16x32xf32>
    %143 = arith.mulf %138, %142 : vector<16x32xf32>
    %144 = vector.broadcast %12 : vector<1x32xf32> to vector<16x32xf32>
    %145 = arith.mulf %143, %144 : vector<16x32xf32>
    %146 = vector.broadcast %13 : vector<1x32xf32> to vector<16x32xf32>
    %147 = arith.addf %145, %146 : vector<16x32xf32>
    %c0_47 = arith.constant 0 : index
    %c0_48 = arith.constant 0 : index
    %148 = vector.load %arg4[%c0_47, %c0_48] : memref<16x32xf32, #tpu.memory_space<vmem>>, vector<16x32xf32>
    tpu.vector_store %arg4[%c0_47, %c0_48], %147 {strides = array<i32>} : memref<16x32xf32, #tpu.memory_space<vmem>>, vector<16x32xf32>,
    return
  }
}

</mosaic_0001>

<llo_original>
// kernel: _transformer_block.1
$region0: #{_transformer_block.1}
  #allocation0 [shape = 'u32[]', space=smem, size = 0x4, offset = 0x4, fixed_abs, tag = 'smem constant byte address 0x4 - core index']
  #allocation1 [shape = 'u32[144,128]{1,0:T(1,128)}', space=vmem, size = 0x12000, scoped, tag = 'internal scratch']
  %s0 = inlined_call_operand.hbm [shape: f32[16,32], index: 0, kind: input, shape index: {}]
  %s1 = inlined_call_operand.hbm [shape: bf16[32,448], index: 1, kind: input, shape index: {}]
  %s2 = inlined_call_operand.vmem [shape: f32[8,96], index: 2, kind: input, shape index: {}]
  %s3 = inlined_call_operand.hbm [shape: f32[16,16], index: 3, kind: input, shape index: {}]
  %s4 = inlined_call_operand.hbm [shape: f32[16,32], index: 4, kind: output, shape index: {}]
  %s5 = sld [smem:[#allocation0]]
  $region38: #{_transformer_block.1} parent=0
    _
  %s7 = ssub.s32 1, %s5
  %s8 = scalar_select 0, %s7, %s5
  $region1: #{_transformer_block.1} parent=0
    #allocation2 [shape = 'u8[8192]{0}', space=vmem, size = 0x2000, scoped, tag = 'input window, operand 0, single buffered']
    #allocation3 [shape = 's32[1]{0}', space=sflag, size = 0x4, scoped, tag = 'scoped memory for _transformer_block.1']
    #allocation4 [shape = 's32[1]{0}', space=sflag, size = 0x4, scoped, tag = 'scoped memory for _transformer_block.1']
    #allocation5 [shape = 'u8[32768]{0}', space=vmem, size = 0x8000, scoped, tag = 'input window, operand 1, single buffered']
    #allocation6 [shape = 's32[1]{0}', space=sflag, size = 0x4, scoped, tag = 'scoped memory for _transformer_block.1']
    #allocation7 [shape = 'u8[8192]{0}', space=vmem, size = 0x2000, scoped, tag = 'input window, operand 3, single buffered']
    #allocation8 [shape = 'u8[8192]{0}', space=vmem, size = 0x2000, scoped, tag = 'output window, operand 0, single buffered']
    %9 = vsyncpa [#allocation3], 0
    %10 = vsyncpa [#allocation6], 0
    %11 = vsyncpa [#allocation4], 0
    // Predicated region
    $region2: #{_transformer_block.1} parent=1 // pred_check
      _
    $region3: #{_transformer_block.1} parent=1 // pred_check_branch
      %13 = sbr.rel (0) target = $region5
    $region4: #{_transformer_block.1} parent=1 // pred_region
      %s15 = ssub.s32 256, 256
      %16 = vsyncadd [#allocation3], %s15
      %s17 = sshll.u32 [#allocation2], 4
      %s18 = int_to_ptr.vmem [resolvable:$true] %s17
      %23 = dma.hbm_to_vmem [thread:$0]  %s0, 256, %s18, [#allocation3], 128, 128, 8
    $region5: #{_transformer_block.1} parent=1 // pred_fallthru
      _
    // Predicated region
    $region6: #{_transformer_block.1} parent=1 // pred_check
      _
    $region7: #{_transformer_block.1} parent=1 // pred_check_branch
      %25 = sbr.rel (0) target = $region9
    $region8: #{_transformer_block.1} parent=1 // pred_region
      %s27 = ssub.s32 1024, 1024
      %28 = vsyncadd [#allocation6], %s27
      %s29 = sshll.u32 [#allocation5], 4
      %s30 = int_to_ptr.vmem [resolvable:$true] %s29
      %35 = dma.hbm_to_vmem [thread:$0]  %s1, 1024, %s30, [#allocation6], 256, 256, 16
    $region9: #{_transformer_block.1} parent=1 // pred_fallthru
      _
    // Predicated region
    $region10: #{_transformer_block.1} parent=1 // pred_check
      _
    $region11: #{_transformer_block.1} parent=1 // pred_check_branch
      %37 = sbr.rel (0) target = $region13
    $region12: #{_transformer_block.1} parent=1 // pred_region
      _
    $region13: #{_transformer_block.1} parent=1 // pred_fallthru
      _
    // Predicated region
    $region14: #{_transformer_block.1} parent=1 // pred_check
      _
    $region15: #{_transformer_block.1} parent=1 // pred_check_branch
      %39 = sbr.rel (0) target = $region17
    $region16: #{_transformer_block.1} parent=1 // pred_region
      %s41 = ssub.s32 256, 256
      %42 = vsyncadd [#allocation6], %s41
      %s43 = sshll.u32 [#allocation7], 4
      %s44 = int_to_ptr.vmem [resolvable:$true] %s43
      %49 = dma.hbm_to_vmem [thread:$0]  %s3, 256, %s44, [#allocation6], 128, 128, 8
    $region17: #{_transformer_block.1} parent=1 // pred_fallthru
      _
    // Predicated region
    $region18: #{_transformer_block.1} parent=1 // pred_check
      _
    $region19: #{_transformer_block.1} parent=1 // pred_check_branch
      %51 = sbr.rel (0) target = $region21
    $region20: #{_transformer_block.1} parent=1 // pred_region
      %52 = dma.done [#allocation3], 256
    $region21: #{_transformer_block.1} parent=1 // pred_fallthru
      _
    // Predicated region
    $region22: #{_transformer_block.1} parent=1 // pred_check
      _
    $region23: #{_transformer_block.1} parent=1 // pred_check_branch
      %54 = sbr.rel (0) target = $region25
    $region24: #{_transformer_block.1} parent=1 // pred_region
      %55 = dma.done [#allocation6], 1024
    $region25: #{_transformer_block.1} parent=1 // pred_fallthru
      _
    // Predicated region
    $region26: #{_transformer_block.1} parent=1 // pred_check
      _
    $region27: #{_transformer_block.1} parent=1 // pred_check_branch
      %57 = sbr.rel (0) target = $region29
    $region28: #{_transformer_block.1} parent=1 // pred_region
      %58 = dma.done [#allocation6], 256
    $region29: #{_transformer_block.1} parent=1 // pred_fallthru
      _
    %v60 = vld [vmem:[#allocation2] sm:$0xff]
    %v61 = vld [vmem:[#allocation2 + $0x8] sm:$0xff]
    %v62 = vpack.c.bf16 %v61, %v60
    %v63 = vld [vmem:[#allocation5] sm:$0xf]
    %v64 = vld [vmem:[#allocation5 + $0x10] sm:$0xf]
    %v65 = vld [vmem:[#allocation5 + $0x20] sm:$0xf]
    %v66 = vld [vmem:[#allocation5 + $0x30] sm:$0xf]
    %v67 = vld [vmem:[#allocation5 + $0x4] sm:$0xf]
    %v68 = vld [vmem:[#allocation5 + $0x14] sm:$0xf]
    %v69 = vld [vmem:[#allocation5 + $0x24] sm:$0xf]
    %v70 = vld [vmem:[#allocation5 + $0x34] sm:$0xf]
    %v71 = vld [vmem:[#allocation5 + $0x8] sm:$0xf]
    %v72 = vld [vmem:[#allocation5 + $0x18] sm:$0xf]
    %v73 = vld [vmem:[#allocation5 + $0x28] sm:$0xf]
    %v74 = vld [vmem:[#allocation5 + $0x38] sm:$0xf]
    %v75 = vld [vmem:[#allocation5 + $0xc] sm:$0xf]
    %v76 = vld [vmem:[#allocation5 + $0x1c] sm:$0xf]
    %v77 = vld [vmem:[#allocation5 + $0x2c] sm:$0xf]
    %v78 = vld [vmem:[#allocation5 + $0x3c] sm:$0xf]
    %v79 = vld [vmem:[%s2] sm:$0x1]
    %v80 = vld [vmem:[%s2 + $0x1] sm:$0x1]
    %v81 = vld [vmem:[%s2 + $0x2] sm:$0x1]
    %v82 = vld [vmem:[%s2 + $0x3] sm:$0x1]
    %v83 = vld [vmem:[%s2 + $0x4] sm:$0x1]
    %v84 = vld [vmem:[%s2 + $0x5] sm:$0x1]
    %v85 = vld [vmem:[%s2 + $0x6] sm:$0x1]
    %v86 = vld [vmem:[%s2 + $0x7] sm:$0x1]
    %v87 = vlaneseq
    %v88 = vshrl.u32 %v87, 7
    %v89 = vsub.s32 0, %v88
    %v90 = vrot.slane %v79, %v89
    %v95 = vunpack.c.l.b16 %v63
    %v96 = vunpack.c.l.b16 %v64
    %v97 = vunpack.c.l.b16 %v65
    %v98 = vunpack.c.l.b16 %v66
    %v99 = vpack.c.b16 %v96, %v95
    %v100 = vpack.c.b16 %v98, %v97
    %vm103 = vcmask 261120
    %v105 = vsel %vm103, %v62, 0
    %107 = vmatprep.subr.bf16.mxu0 0
    %108 = vmatpush1.bf16.msra.mxu0 %v99
    %109 = vmatprep.subr.bf16.mxu0 0
    %110 = vmatpush1.bf16.msra.mxu0 %v100
    %111 = vmatprep.subr.bf16.mxu0 0
    %112 = vmatpush1.bf16.msra.mxu0 0
    %113 = vmatprep.subr.bf16.mxu0 0
    %114 = vmatpush1.bf16.msra.mxu0 0
    %115 = vmatprep.subr.bf16.mxu0 0
    %116 = vmatpush1.bf16.msra.mxu0 0
    %117 = vmatprep.subr.bf16.mxu0 0
    %118 = vmatpush1.bf16.msra.mxu0 0
    %119 = vmatprep.subr.bf16.mxu0 0
    %120 = vmatpush1.bf16.msra.mxu0 0
    %121 = vmatprep.subr.bf16.mxu0 0
    %122 = vmatpush1.bf16.msra.mxu0 0
    %123 = vmatprep.subr.bf16.mxu0 0
    %124 = vmatpush1.bf16.msra.mxu0 0
    %125 = vmatprep.subr.bf16.mxu0 0
    %126 = vmatpush1.bf16.msra.mxu0 0
    %127 = vmatprep.subr.bf16.mxu0 0
    %128 = vmatpush1.bf16.msra.mxu0 0
    %129 = vmatprep.subr.bf16.mxu0 0
    %130 = vmatpush1.bf16.msra.mxu0 0
    %131 = vmatprep.subr.bf16.mxu0 0
    %132 = vmatpush1.bf16.msra.mxu0 0
    %133 = vmatprep.subr.bf16.mxu0 0
    %134 = vmatpush1.bf16.msra.mxu0 0
    %135 = vmatprep.subr.bf16.mxu0 0
    %136 = vmatpush1.bf16.msra.mxu0 0
    %137 = vmatprep.subr.bf16.mxu0 0
    %138 = vmatpush1.bf16.msra.mxu0 0
    %139 = vmatprep.mubr.bf16.mxu0 0
    %140 = vmatmul.mubr.bf16.gmra.mrb[0].mxu0 %v105
    %v141 = vpop.f32.mrb[0].mxu0
    %v142 = vadd.f32 %v90, %v141
    %v143 = vpop.f32.mrb[0].mxu0
    %v144 = vpop.f32.mrb[0].mxu0
    %v145 = vadd.f32 %v90, %v144
    %v146 = vpop.f32.mrb[0].mxu0
    %147 = vdwg.mxu0
    %v148 = vpack.c.bf16 %v145, %v142
    %v149 = vld [vmem:[#allocation7] sm:$0xff]
    %v150 = vld [vmem:[#allocation7 + $0x8] sm:$0xff]
    %152 = vrot.lane.b32.xlu0 %v148, 96
    %v153 = vpop.permute.xlu0 %152
    %vm154 = vcmask 64512
    %v156 = vsel %vm154, %v148, 0
    %v159 = vsel %vm154, %v153, 0
    %161 = vmatprep.subr.bf16.mxu0 0
    %162 = vmatpush1.bf16.xpose.msra.mxu0 %v159
    %163 = vmatprep.subr.bf16.mxu0 0
    %164 = vmatpush1.bf16.xpose.msra.mxu0 0
    %165 = vmatprep.subr.bf16.mxu0 0
    %166 = vmatpush1.bf16.xpose.msra.mxu0 0
    %167 = vmatprep.subr.bf16.mxu0 0
    %168 = vmatpush1.bf16.xpose.msra.mxu0 0
    %169 = vmatprep.subr.bf16.mxu0 0
    %170 = vmatpush1.bf16.xpose.msra.mxu0 0
    %171 = vmatprep.subr.bf16.mxu0 0
    %172 = vmatpush1.bf16.xpose.msra.mxu0 0
    %173 = vmatprep.subr.bf16.mxu0 0
    %174 = vmatpush1.bf16.xpose.msra.mxu0 0
    %175 = vmatprep.subr.bf16.mxu0 0
    %176 = vmatpush1.bf16.xpose.msra.mxu0 0
    %177 = vmatprep.subr.bf16.mxu0 0
    %178 = vmatpush1.bf16.xpose.msra.mxu0 0
    %179 = vmatprep.subr.bf16.mxu0 0
    %180 = vmatpush1.bf16.xpose.msra.mxu0 0
    %181 = vmatprep.subr.bf16.mxu0 0
    %182 = vmatpush1.bf16.xpose.msra.mxu0 0
    %183 = vmatprep.subr.bf16.mxu0 0
    %184 = vmatpush1.bf16.xpose.msra.mxu0 0
    %185 = vmatprep.subr.bf16.mxu0 0
    %186 = vmatpush1.bf16.xpose.msra.mxu0 0
    %187 = vmatprep.subr.bf16.mxu0 0
    %188 = vmatpush1.bf16.xpose.msra.mxu0 0
    %189 = vmatprep.subr.bf16.mxu0 0
    %190 = vmatpush1.bf16.xpose.msra.mxu0 0
    %191 = vmatprep.subr.bf16.mxu0 0
    %192 = vmatpush1.bf16.xpose.msra.mxu0 0
    %193 = vmatprep.mubr.bf16.mxu0 0
    %194 = vmatmul.mubr.bf16.gmra.mrb[0].mxu0 %v156
    %v195 = vpop.f32.mrb[0].mxu0
    %v196 = vadd.f32 %v149, %v195
    %v197 = vpop.f32.mrb[0].mxu0
    %v198 = vpop.f32.mrb[0].mxu0
    %v199 = vadd.f32 %v150, %v198
    %v200 = vpop.f32.mrb[0].mxu0
    %201 = vdwg.mxu0
    %vm202 = vcmask 130048
    %v203 = vsel %vm202, %v196, -inf
    %204 = vmax.xlane.f32.xlu0 %v203
    %v205 = vpop.xlane.xlu0 %204
    %v206 = vsel %vm202, %v199, -inf
    %207 = vmax.xlane.f32.xlu0 %v206
    %v208 = vpop.xlane.xlu0 %207
    %v209 = vsub.f32 %v196, %v205
    %v210 = vsub.f32 %v199, %v208
    %v211 = vmul.f32 %v209, 1.442695
    %v212 = vpow.pop %v211
    %v213 = vmul.f32 %v210, 1.442695
    %v214 = vpow.pop %v213
    %v215 = vsel %vm202, %v212, 0.0
    %216 = vadd.xlane.f32.xlu0 %v215
    %v217 = vpop.xlane.xlu0 %216
    %v218 = vsel %vm202, %v214, 0.0
    %219 = vadd.xlane.f32.xlu0 %v218
    %v220 = vpop.xlane.xlu0 %219
    %v221 = vrcp.pop %v217
    %v222 = vrcp.pop %v220
    %v223 = vmul.f32 %v212, %v221
    %v224 = vmul.f32 %v214, %v222
    %v225 = vpack.c.bf16 %v224, %v223
    %226 = vrot.lane.b32.xlu0 %v148, 64
    %v227 = vpop.permute.xlu0 %226
    %v230 = vsel %vm202, %v225, 0
    %232 = vmatprep.subr.bf16.mxu0 0
    %233 = vmatpush1.bf16.msra.mxu0 %v227
    %234 = vmatprep.subr.bf16.mxu0 0
    %235 = vmatpush1.bf16.msra.mxu0 0
    %236 = vmatprep.subr.bf16.mxu0 0
    %237 = vmatpush1.bf16.msra.mxu0 0
    %238 = vmatprep.subr.bf16.mxu0 0
    %239 = vmatpush1.bf16.msra.mxu0 0
    %240 = vmatprep.subr.bf16.mxu0 0
    %241 = vmatpush1.bf16.msra.mxu0 0
    %242 = vmatprep.subr.bf16.mxu0 0
    %243 = vmatpush1.bf16.msra.mxu0 0
    %244 = vmatprep.subr.bf16.mxu0 0
    %245 = vmatpush1.bf16.msra.mxu0 0
    %246 = vmatprep.subr.bf16.mxu0 0
    %247 = vmatpush1.bf16.msra.mxu0 0
    %248 = vmatprep.subr.bf16.mxu0 0
    %249 = vmatpush1.bf16.msra.mxu0 0
    %250 = vmatprep.subr.bf16.mxu0 0
    %251 = vmatpush1.bf16.msra.mxu0 0
    %252 = vmatprep.subr.bf16.mxu0 0
    %253 = vmatpush1.bf16.msra.mxu0 0
    %254 = vmatprep.subr.bf16.mxu0 0
    %255 = vmatpush1.bf16.msra.mxu0 0
    %256 = vmatprep.subr.bf16.mxu0 0
    %257 = vmatpush1.bf16.msra.mxu0 0
    %258 = vmatprep.subr.bf16.mxu0 0
    %259 = vmatpush1.bf16.msra.mxu0 0
    %260 = vmatprep.subr.bf16.mxu0 0
    %261 = vmatpush1.bf16.msra.mxu0 0
    %262 = vmatprep.subr.bf16.mxu0 0
    %263 = vmatpush1.bf16.msra.mxu0 0
    %264 = vmatprep.mubr.bf16.mxu0 0
    %265 = vmatmul.mubr.bf16.gmra.mrb[0].mxu0 %v230
    %v266 = vpop.f32.mrb[0].mxu0
    %v267 = vadd.f32 0.0, %v266
    %v268 = vpop.f32.mrb[0].mxu0
    %v269 = vpop.f32.mrb[0].mxu0
    %v270 = vadd.f32 0.0, %v269
    %v271 = vpop.f32.mrb[0].mxu0
    %272 = vdwg.mxu0
    %273 = vrot.lane.b32.xlu0 %v148, 120
    %v274 = vpop.permute.xlu0 %273
    %275 = vrot.lane.b32.xlu0 %v148, 88
    %v276 = vpop.permute.xlu0 %275
    %v278 = vsel %vm154, %v274, 0
    %v281 = vsel %vm154, %v276, 0
    %283 = vmatprep.subr.bf16.mxu0 0
    %284 = vmatpush1.bf16.xpose.msra.mxu0 %v281
    %285 = vmatprep.subr.bf16.mxu0 0
    %286 = vmatpush1.bf16.xpose.msra.mxu0 0
    %287 = vmatprep.subr.bf16.mxu0 0
    %288 = vmatpush1.bf16.xpose.msra.mxu0 0
    %289 = vmatprep.subr.bf16.mxu0 0
    %290 = vmatpush1.bf16.xpose.msra.mxu0 0
    %291 = vmatprep.subr.bf16.mxu0 0
    %292 = vmatpush1.bf16.xpose.msra.mxu0 0
    %293 = vmatprep.subr.bf16.mxu0 0
    %294 = vmatpush1.bf16.xpose.msra.mxu0 0
    %295 = vmatprep.subr.bf16.mxu0 0
    %296 = vmatpush1.bf16.xpose.msra.mxu0 0
    %297 = vmatprep.subr.bf16.mxu0 0
    %298 = vmatpush1.bf16.xpose.msra.mxu0 0
    %299 = vmatprep.subr.bf16.mxu0 0
    %300 = vmatpush1.bf16.xpose.msra.mxu0 0
    %301 = vmatprep.subr.bf16.mxu0 0
    %302 = vmatpush1.bf16.xpose.msra.mxu0 0
    %303 = vmatprep.subr.bf16.mxu0 0
    %304 = vmatpush1.bf16.xpose.msra.mxu0 0
    %305 = vmatprep.subr.bf16.mxu0 0
    %306 = vmatpush1.bf16.xpose.msra.mxu0 0
    %307 = vmatprep.subr.bf16.mxu0 0
    %308 = vmatpush1.bf16.xpose.msra.mxu0 0
    %309 = vmatprep.subr.bf16.mxu0 0
    %310 = vmatpush1.bf16.xpose.msra.mxu0 0
    %311 = vmatprep.subr.bf16.mxu0 0
    %312 = vmatpush1.bf16.xpose.msra.mxu0 0
    %313 = vmatprep.subr.bf16.mxu0 0
    %314 = vmatpush1.bf16.xpose.msra.mxu0 0
    %315 = vmatprep.mubr.bf16.mxu0 0
    %316 = vmatmul.mubr.bf16.gmra.mrb[0].mxu0 %v278
    %v317 = vpop.f32.mrb[0].mxu0
    %v318 = vadd.f32 %v149, %v317
    %v319 = vpop.f32.mrb[0].mxu0
    %v320 = vpop.f32.mrb[0].mxu0
    %v321 = vadd.f32 %v150, %v320
    %v322 = vpop.f32.mrb[0].mxu0
    %323 = vdwg.mxu0
    %v324 = vsel %vm202, %v318, -inf
    %325 = vmax.xlane.f32.xlu0 %v324
    %v326 = vpop.xlane.xlu0 %325
    %v327 = vsel %vm202, %v321, -inf
    %328 = vmax.xlane.f32.xlu0 %v327
    %v329 = vpop.xlane.xlu0 %328
    %v330 = vsub.f32 %v318, %v326
    %v331 = vsub.f32 %v321, %v329
    %v332 = vmul.f32 %v330, 1.442695
    %v333 = vpow.pop %v332
    %v334 = vmul.f32 %v331, 1.442695
    %v335 = vpow.pop %v334
    %v336 = vsel %vm202, %v333, 0.0
    %337 = vadd.xlane.f32.xlu0 %v336
    %v338 = vpop.xlane.xlu0 %337
    %v339 = vsel %vm202, %v335, 0.0
    %340 = vadd.xlane.f32.xlu0 %v339
    %v341 = vpop.xlane.xlu0 %340
    %v342 = vrcp.pop %v338
    %v343 = vrcp.pop %v341
    %v344 = vmul.f32 %v333, %v342
    %v345 = vmul.f32 %v335, %v343
    %v346 = vpack.c.bf16 %v345, %v344
    %347 = vrot.lane.b32.xlu0 %v148, 56
    %v348 = vpop.permute.xlu0 %347
    %v351 = vsel %vm202, %v346, 0
    %353 = vmatprep.subr.bf16.mxu0 0
    %354 = vmatpush1.bf16.msra.mxu0 %v348
    %355 = vmatprep.subr.bf16.mxu0 0
    %356 = vmatpush1.bf16.msra.mxu0 0
    %357 = vmatprep.subr.bf16.mxu0 0
    %358 = vmatpush1.bf16.msra.mxu0 0
    %359 = vmatprep.subr.bf16.mxu0 0
    %360 = vmatpush1.bf16.msra.mxu0 0
    %361 = vmatprep.subr.bf16.mxu0 0
    %362 = vmatpush1.bf16.msra.mxu0 0
    %363 = vmatprep.subr.bf16.mxu0 0
    %364 = vmatpush1.bf16.msra.mxu0 0
    %365 = vmatprep.subr.bf16.mxu0 0
    %366 = vmatpush1.bf16.msra.mxu0 0
    %367 = vmatprep.subr.bf16.mxu0 0
    %368 = vmatpush1.bf16.msra.mxu0 0
    %369 = vmatprep.subr.bf16.mxu0 0
    %370 = vmatpush1.bf16.msra.mxu0 0
    %371 = vmatprep.subr.bf16.mxu0 0
    %372 = vmatpush1.bf16.msra.mxu0 0
    %373 = vmatprep.subr.bf16.mxu0 0
    %374 = vmatpush1.bf16.msra.mxu0 0
    %375 = vmatprep.subr.bf16.mxu0 0
    %376 = vmatpush1.bf16.msra.mxu0 0
    %377 = vmatprep.subr.bf16.mxu0 0
    %378 = vmatpush1.bf16.msra.mxu0 0
    %379 = vmatprep.subr.bf16.mxu0 0
    %380 = vmatpush1.bf16.msra.mxu0 0
    %381 = vmatprep.subr.bf16.mxu0 0
    %382 = vmatpush1.bf16.msra.mxu0 0
    %383 = vmatprep.subr.bf16.mxu0 0
    %384 = vmatpush1.bf16.msra.mxu0 0
    %385 = vmatprep.mubr.bf16.mxu0 0
    %386 = vmatmul.mubr.bf16.gmra.mrb[0].mxu0 %v351
    %v387 = vpop.f32.mrb[0].mxu0
    %v388 = vadd.f32 0.0, %v387
    %v389 = vpop.f32.mrb[0].mxu0
    %v390 = vpop.f32.mrb[0].mxu0
    %v391 = vadd.f32 0.0, %v390
    %v392 = vpop.f32.mrb[0].mxu0
    %393 = vdwg.mxu0
    %394 = vrot.lane.b32.xlu0 %v148, 112
    %v395 = vpop.permute.xlu0 %394
    %396 = vrot.lane.b32.xlu0 %v148, 80
    %v397 = vpop.permute.xlu0 %396
    %v399 = vsel %vm154, %v395, 0
    %v402 = vsel %vm154, %v397, 0
    %404 = vmatprep.subr.bf16.mxu0 0
    %405 = vmatpush1.bf16.xpose.msra.mxu0 %v402
    %406 = vmatprep.subr.bf16.mxu0 0
    %407 = vmatpush1.bf16.xpose.msra.mxu0 0
    %408 = vmatprep.subr.bf16.mxu0 0
    %409 = vmatpush1.bf16.xpose.msra.mxu0 0
    %410 = vmatprep.subr.bf16.mxu0 0
    %411 = vmatpush1.bf16.xpose.msra.mxu0 0
    %412 = vmatprep.subr.bf16.mxu0 0
    %413 = vmatpush1.bf16.xpose.msra.mxu0 0
    %414 = vmatprep.subr.bf16.mxu0 0
    %415 = vmatpush1.bf16.xpose.msra.mxu0 0
    %416 = vmatprep.subr.bf16.mxu0 0
    %417 = vmatpush1.bf16.xpose.msra.mxu0 0
    %418 = vmatprep.subr.bf16.mxu0 0
    %419 = vmatpush1.bf16.xpose.msra.mxu0 0
    %420 = vmatprep.subr.bf16.mxu0 0
    %421 = vmatpush1.bf16.xpose.msra.mxu0 0
    %422 = vmatprep.subr.bf16.mxu0 0
    %423 = vmatpush1.bf16.xpose.msra.mxu0 0
    %424 = vmatprep.subr.bf16.mxu0 0
    %425 = vmatpush1.bf16.xpose.msra.mxu0 0
    %426 = vmatprep.subr.bf16.mxu0 0
    %427 = vmatpush1.bf16.xpose.msra.mxu0 0
    %428 = vmatprep.subr.bf16.mxu0 0
    %429 = vmatpush1.bf16.xpose.msra.mxu0 0
    %430 = vmatprep.subr.bf16.mxu0 0
    %431 = vmatpush1.bf16.xpose.msra.mxu0 0
    %432 = vmatprep.subr.bf16.mxu0 0
    %433 = vmatpush1.bf16.xpose.msra.mxu0 0
    %434 = vmatprep.subr.bf16.mxu0 0
    %435 = vmatpush1.bf16.xpose.msra.mxu0 0
    %436 = vmatprep.mubr.bf16.mxu0 0
    %437 = vmatmul.mubr.bf16.gmra.mrb[0].mxu0 %v399
    %v438 = vpop.f32.mrb[0].mxu0
    %v439 = vadd.f32 %v149, %v438
    %v440 = vpop.f32.mrb[0].mxu0
    %v441 = vpop.f32.mrb[0].mxu0
    %v442 = vadd.f32 %v150, %v441
    %v443 = vpop.f32.mrb[0].mxu0
    %444 = vdwg.mxu0
    %v445 = vsel %vm202, %v439, -inf
    %446 = vmax.xlane.f32.xlu0 %v445
    %v447 = vpop.xlane.xlu0 %446
    %v448 = vsel %vm202, %v442, -inf
    %449 = vmax.xlane.f32.xlu0 %v448
    %v450 = vpop.xlane.xlu0 %449
    %v451 = vsub.f32 %v439, %v447
    %v452 = vsub.f32 %v442, %v450
    %v453 = vmul.f32 %v451, 1.442695
    %v454 = vpow.pop %v453
    %v455 = vmul.f32 %v452, 1.442695
    %v456 = vpow.pop %v455
    %v457 = vsel %vm202, %v454, 0.0
    %458 = vadd.xlane.f32.xlu0 %v457
    %v459 = vpop.xlane.xlu0 %458
    %v460 = vsel %vm202, %v456, 0.0
    %461 = vadd.xlane.f32.xlu0 %v460
    %v462 = vpop.xlane.xlu0 %461
    %v463 = vrcp.pop %v459
    %v464 = vrcp.pop %v462
    %v465 = vmul.f32 %v454, %v463
    %v466 = vmul.f32 %v456, %v464
    %v467 = vpack.c.bf16 %v466, %v465
    %468 = vrot.lane.b32.xlu0 %v148, 48
    %v469 = vpop.permute.xlu0 %468
    %v472 = vsel %vm202, %v467, 0
    %474 = vmatprep.subr.bf16.mxu0 0
    %475 = vmatpush1.bf16.msra.mxu0 %v469
    %476 = vmatprep.subr.bf16.mxu0 0
    %477 = vmatpush1.bf16.msra.mxu0 0
    %478 = vmatprep.subr.bf16.mxu0 0
    %479 = vmatpush1.bf16.msra.mxu0 0
    %480 = vmatprep.subr.bf16.mxu0 0
    %481 = vmatpush1.bf16.msra.mxu0 0
    %482 = vmatprep.subr.bf16.mxu0 0
    %483 = vmatpush1.bf16.msra.mxu0 0
    %484 = vmatprep.subr.bf16.mxu0 0
    %485 = vmatpush1.bf16.msra.mxu0 0
    %486 = vmatprep.subr.bf16.mxu0 0
    %487 = vmatpush1.bf16.msra.mxu0 0
    %488 = vmatprep.subr.bf16.mxu0 0
    %489 = vmatpush1.bf16.msra.mxu0 0
    %490 = vmatprep.subr.bf16.mxu0 0
    %491 = vmatpush1.bf16.msra.mxu0 0
    %492 = vmatprep.subr.bf16.mxu0 0
    %493 = vmatpush1.bf16.msra.mxu0 0
    %494 = vmatprep.subr.bf16.mxu0 0
    %495 = vmatpush1.bf16.msra.mxu0 0
    %496 = vmatprep.subr.bf16.mxu0 0
    %497 = vmatpush1.bf16.msra.mxu0 0
    %498 = vmatprep.subr.bf16.mxu0 0
    %499 = vmatpush1.bf16.msra.mxu0 0
    %500 = vmatprep.subr.bf16.mxu0 0
    %501 = vmatpush1.bf16.msra.mxu0 0
    %502 = vmatprep.subr.bf16.mxu0 0
    %503 = vmatpush1.bf16.msra.mxu0 0
    %504 = vmatprep.subr.bf16.mxu0 0
    %505 = vmatpush1.bf16.msra.mxu0 0
    %506 = vmatprep.mubr.bf16.mxu0 0
    %507 = vmatmul.mubr.bf16.gmra.mrb[0].mxu0 %v472
    %v508 = vpop.f32.mrb[0].mxu0
    %v509 = vadd.f32 0.0, %v508
    %v510 = vpop.f32.mrb[0].mxu0
    %v511 = vpop.f32.mrb[0].mxu0
    %v512 = vadd.f32 0.0, %v511
    %v513 = vpop.f32.mrb[0].mxu0
    %514 = vdwg.mxu0
    %515 = vrot.lane.b32.xlu0 %v148, 104
    %v516 = vpop.permute.xlu0 %515
    %517 = vrot.lane.b32.xlu0 %v148, 72
    %v518 = vpop.permute.xlu0 %517
    %v520 = vsel %vm154, %v516, 0
    %v523 = vsel %vm154, %v518, 0
    %525 = vmatprep.subr.bf16.mxu0 0
    %526 = vmatpush1.bf16.xpose.msra.mxu0 %v523
    %527 = vmatprep.subr.bf16.mxu0 0
    %528 = vmatpush1.bf16.xpose.msra.mxu0 0
    %529 = vmatprep.subr.bf16.mxu0 0
    %530 = vmatpush1.bf16.xpose.msra.mxu0 0
    %531 = vmatprep.subr.bf16.mxu0 0
    %532 = vmatpush1.bf16.xpose.msra.mxu0 0
    %533 = vmatprep.subr.bf16.mxu0 0
    %534 = vmatpush1.bf16.xpose.msra.mxu0 0
    %535 = vmatprep.subr.bf16.mxu0 0
    %536 = vmatpush1.bf16.xpose.msra.mxu0 0
    %537 = vmatprep.subr.bf16.mxu0 0
    %538 = vmatpush1.bf16.xpose.msra.mxu0 0
    %539 = vmatprep.subr.bf16.mxu0 0
    %540 = vmatpush1.bf16.xpose.msra.mxu0 0
    %541 = vmatprep.subr.bf16.mxu0 0
    %542 = vmatpush1.bf16.xpose.msra.mxu0 0
    %543 = vmatprep.subr.bf16.mxu0 0
    %544 = vmatpush1.bf16.xpose.msra.mxu0 0
    %545 = vmatprep.subr.bf16.mxu0 0
    %546 = vmatpush1.bf16.xpose.msra.mxu0 0
    %547 = vmatprep.subr.bf16.mxu0 0
    %548 = vmatpush1.bf16.xpose.msra.mxu0 0
    %549 = vmatprep.subr.bf16.mxu0 0
    %550 = vmatpush1.bf16.xpose.msra.mxu0 0
    %551 = vmatprep.subr.bf16.mxu0 0
    %552 = vmatpush1.bf16.xpose.msra.mxu0 0
    %553 = vmatprep.subr.bf16.mxu0 0
    %554 = vmatpush1.bf16.xpose.msra.mxu0 0
    %555 = vmatprep.subr.bf16.mxu0 0
    %556 = vmatpush1.bf16.xpose.msra.mxu0 0
    %557 = vmatprep.mubr.bf16.mxu0 0
    %558 = vmatmul.mubr.bf16.gmra.mrb[0].mxu0 %v520
    %v559 = vpop.f32.mrb[0].mxu0
    %v560 = vadd.f32 %v149, %v559
    %v561 = vpop.f32.mrb[0].mxu0
    %v562 = vpop.f32.mrb[0].mxu0
    %v563 = vadd.f32 %v150, %v562
    %v564 = vpop.f32.mrb[0].mxu0
    %565 = vdwg.mxu0
    %v566 = vsel %vm202, %v560, -inf
    %567 = vmax.xlane.f32.xlu0 %v566
    %v568 = vpop.xlane.xlu0 %567
    %v569 = vsel %vm202, %v563, -inf
    %570 = vmax.xlane.f32.xlu0 %v569
    %v571 = vpop.xlane.xlu0 %570
    %v572 = vsub.f32 %v560, %v568
    %v573 = vsub.f32 %v563, %v571
    %v574 = vmul.f32 %v572, 1.442695
    %v575 = vpow.pop %v574
    %v576 = vmul.f32 %v573, 1.442695
    %v577 = vpow.pop %v576
    %v578 = vsel %vm202, %v575, 0.0
    %579 = vadd.xlane.f32.xlu0 %v578
    %v580 = vpop.xlane.xlu0 %579
    %v581 = vsel %vm202, %v577, 0.0
    %582 = vadd.xlane.f32.xlu0 %v581
    %v583 = vpop.xlane.xlu0 %582
    %v584 = vrcp.pop %v580
    %v585 = vrcp.pop %v583
    %v586 = vmul.f32 %v575, %v584
    %v587 = vmul.f32 %v577, %v585
    %v588 = vpack.c.bf16 %v587, %v586
    %589 = vrot.lane.b32.xlu0 %v148, 40
    %v590 = vpop.permute.xlu0 %589
    %v593 = vsel %vm202, %v588, 0
    %595 = vmatprep.subr.bf16.mxu0 0
    %596 = vmatpush1.bf16.msra.mxu0 %v590
    %597 = vmatprep.subr.bf16.mxu0 0
    %598 = vmatpush1.bf16.msra.mxu0 0
    %599 = vmatprep.subr.bf16.mxu0 0
    %600 = vmatpush1.bf16.msra.mxu0 0
    %601 = vmatprep.subr.bf16.mxu0 0
    %602 = vmatpush1.bf16.msra.mxu0 0
    %603 = vmatprep.subr.bf16.mxu0 0
    %604 = vmatpush1.bf16.msra.mxu0 0
    %605 = vmatprep.subr.bf16.mxu0 0
    %606 = vmatpush1.bf16.msra.mxu0 0
    %607 = vmatprep.subr.bf16.mxu0 0
    %608 = vmatpush1.bf16.msra.mxu0 0
    %609 = vmatprep.subr.bf16.mxu0 0
    %610 = vmatpush1.bf16.msra.mxu0 0
    %611 = vmatprep.subr.bf16.mxu0 0
    %612 = vmatpush1.bf16.msra.mxu0 0
    %613 = vmatprep.subr.bf16.mxu0 0
    %614 = vmatpush1.bf16.msra.mxu0 0
    %615 = vmatprep.subr.bf16.mxu0 0
    %616 = vmatpush1.bf16.msra.mxu0 0
    %617 = vmatprep.subr.bf16.mxu0 0
    %618 = vmatpush1.bf16.msra.mxu0 0
    %619 = vmatprep.subr.bf16.mxu0 0
    %620 = vmatpush1.bf16.msra.mxu0 0
    %621 = vmatprep.subr.bf16.mxu0 0
    %622 = vmatpush1.bf16.msra.mxu0 0
    %623 = vmatprep.subr.bf16.mxu0 0
    %624 = vmatpush1.bf16.msra.mxu0 0
    %625 = vmatprep.subr.bf16.mxu0 0
    %626 = vmatpush1.bf16.msra.mxu0 0
    %627 = vmatprep.mubr.bf16.mxu0 0
    %628 = vmatmul.mubr.bf16.gmra.mrb[0].mxu0 %v593
    %v629 = vpop.f32.mrb[0].mxu0
    %v630 = vadd.f32 0.0, %v629
    %v631 = vpop.f32.mrb[0].mxu0
    %v632 = vpop.f32.mrb[0].mxu0
    %v633 = vadd.f32 0.0, %v632
    %v634 = vpop.f32.mrb[0].mxu0
    %635 = vdwg.mxu0
    %638 = vrot.lane.b32.xlu0 %v388, 8
    %v639 = vpop.permute.xlu0 %638
    %640 = vrot.lane.b32.xlu0 %v391, 8
    %v641 = vpop.permute.xlu0 %640
    %646 = vrot.lane.b32.xlu0 %v509, 16
    %v647 = vpop.permute.xlu0 %646
    %648 = vrot.lane.b32.xlu0 %v512, 16
    %v649 = vpop.permute.xlu0 %648
    %654 = vrot.lane.b32.xlu0 %v630, 24
    %v655 = vpop.permute.xlu0 %654
    %656 = vrot.lane.b32.xlu0 %v633, 24
    %v657 = vpop.permute.xlu0 %656
    %v660 = vsel %vm154, %v267, %v639
    %v661 = vsel %vm154, %v270, %v641
    %v662 = vsel %vm202, %v660, %v647
    %v663 = vsel %vm202, %v661, %v649
    %vm664 = vcmask 195584
    %v665 = vsel %vm664, %v662, %v655
    %v666 = vsel %vm664, %v663, %v657
    %v667 = vpack.c.bf16 %v666, %v665
    %v668 = vlaneseq
    %v669 = vshrl.u32 %v668, 7
    %v670 = vsub.s32 0, %v669
    %v671 = vrot.slane %v80, %v670
    %v676 = vunpack.c.l.b16 %v67
    %v677 = vunpack.c.l.b16 %v68
    %v678 = vunpack.c.l.b16 %v69
    %v679 = vunpack.c.l.b16 %v70
    %v680 = vpack.c.b16 %v677, %v676
    %v681 = vpack.c.b16 %v679, %v678
    %v685 = vsel %vm103, %v667, 0
    %687 = vmatprep.subr.bf16.mxu0 0
    %688 = vmatpush1.bf16.msra.mxu0 %v680
    %689 = vmatprep.subr.bf16.mxu0 0
    %690 = vmatpush1.bf16.msra.mxu0 %v681
    %691 = vmatprep.subr.bf16.mxu0 0
    %692 = vmatpush1.bf16.msra.mxu0 0
    %693 = vmatprep.subr.bf16.mxu0 0
    %694 = vmatpush1.bf16.msra.mxu0 0
    %695 = vmatprep.subr.bf16.mxu0 0
    %696 = vmatpush1.bf16.msra.mxu0 0
    %697 = vmatprep.subr.bf16.mxu0 0
    %698 = vmatpush1.bf16.msra.mxu0 0
    %699 = vmatprep.subr.bf16.mxu0 0
    %700 = vmatpush1.bf16.msra.mxu0 0
    %701 = vmatprep.subr.bf16.mxu0 0
    %702 = vmatpush1.bf16.msra.mxu0 0
    %703 = vmatprep.subr.bf16.mxu0 0
    %704 = vmatpush1.bf16.msra.mxu0 0
    %705 = vmatprep.subr.bf16.mxu0 0
    %706 = vmatpush1.bf16.msra.mxu0 0
    %707 = vmatprep.subr.bf16.mxu0 0
    %708 = vmatpush1.bf16.msra.mxu0 0
    %709 = vmatprep.subr.bf16.mxu0 0
    %710 = vmatpush1.bf16.msra.mxu0 0
    %711 = vmatprep.subr.bf16.mxu0 0
    %712 = vmatpush1.bf16.msra.mxu0 0
    %713 = vmatprep.subr.bf16.mxu0 0
    %714 = vmatpush1.bf16.msra.mxu0 0
    %715 = vmatprep.subr.bf16.mxu0 0
    %716 = vmatpush1.bf16.msra.mxu0 0
    %717 = vmatprep.subr.bf16.mxu0 0
    %718 = vmatpush1.bf16.msra.mxu0 0
    %719 = vmatprep.mubr.bf16.mxu0 0
    %720 = vmatmul.mubr.bf16.gmra.mrb[0].mxu0 %v685
    %v721 = vpop.f32.mrb[0].mxu0
    %v722 = vadd.f32 %v671, %v721
    %v723 = vpop.f32.mrb[0].mxu0
    %v724 = vpop.f32.mrb[0].mxu0
    %v725 = vadd.f32 %v671, %v724
    %v726 = vpop.f32.mrb[0].mxu0
    %727 = vdwg.mxu0
    %v728 = vadd.f32 %v60, %v722
    %v729 = vadd.f32 %v61, %v725
    %v730 = vsel %vm103, %v728, 0.0
    %731 = vadd.xlane.f32.xlu0 %v730
    %v732 = vpop.xlane.xlu0 %731
    %v733 = vsel %vm103, %v729, 0.0
    %734 = vadd.xlane.f32.xlu0 %v733
    %v735 = vpop.xlane.xlu0 %734
    %v736 = vrcp.pop 32.0
    %v737 = vmul.f32 %v732, %v736
    %v738 = vmul.f32 %v735, %v736
    %v739 = vsub.f32 %v728, %v737
    %v740 = vsub.f32 %v729, %v738
    %v741 = vmul.f32 %v739, %v739
    %v742 = vmul.f32 %v740, %v740
    %v743 = vsel %vm103, %v741, 0.0
    %744 = vadd.xlane.f32.xlu0 %v743
    %v745 = vpop.xlane.xlu0 %744
    %v746 = vsel %vm103, %v742, 0.0
    %747 = vadd.xlane.f32.xlu0 %v746
    %v748 = vpop.xlane.xlu0 %747
    %v749 = vmul.f32 %v745, %v736
    %v750 = vmul.f32 %v748, %v736
    %v751 = vadd.f32 %v749, 1e-05
    %v752 = vadd.f32 %v750, 1e-05
    %v753 = vrsqrt.pop %v751
    %v754 = vrsqrt.pop %v752
    %v755 = vmul.f32 %v739, %v753
    %v756 = vmul.f32 %v740, %v754
    %v757 = vlaneseq
    %v758 = vshrl.u32 %v757, 7
    %v759 = vsub.s32 0, %v758
    %v760 = vrot.slane %v81, %v759
    %v761 = vmul.f32 %v755, %v760
    %v762 = vmul.f32 %v756, %v760
    %v763 = vlaneseq
    %v764 = vshrl.u32 %v763, 7
    %v765 = vsub.s32 0, %v764
    %v766 = vrot.slane %v82, %v765
    %v767 = vadd.f32 %v761, %v766
    %v768 = vadd.f32 %v762, %v766
    %v769 = vpack.c.bf16 %v768, %v767
    %v770 = vlaneseq
    %v771 = vshrl.u32 %v770, 7
    %v772 = vsub.s32 0, %v771
    %v773 = vrot.slane %v83, %v772
    %v778 = vunpack.c.l.b16 %v71
    %v779 = vunpack.c.l.b16 %v72
    %v780 = vunpack.c.l.b16 %v73
    %v781 = vunpack.c.l.b16 %v74
    %v782 = vpack.c.b16 %v779, %v778
    %v783 = vpack.c.b16 %v781, %v780
    %v787 = vsel %vm103, %v769, 0
    %789 = vmatprep.subr.bf16.mxu0 0
    %790 = vmatpush1.bf16.msra.mxu0 %v782
    %791 = vmatprep.subr.bf16.mxu0 0
    %792 = vmatpush1.bf16.msra.mxu0 %v783
    %793 = vmatprep.subr.bf16.mxu0 0
    %794 = vmatpush1.bf16.msra.mxu0 0
    %795 = vmatprep.subr.bf16.mxu0 0
    %796 = vmatpush1.bf16.msra.mxu0 0
    %797 = vmatprep.subr.bf16.mxu0 0
    %798 = vmatpush1.bf16.msra.mxu0 0
    %799 = vmatprep.subr.bf16.mxu0 0
    %800 = vmatpush1.bf16.msra.mxu0 0
    %801 = vmatprep.subr.bf16.mxu0 0
    %802 = vmatpush1.bf16.msra.mxu0 0
    %803 = vmatprep.subr.bf16.mxu0 0
    %804 = vmatpush1.bf16.msra.mxu0 0
    %805 = vmatprep.subr.bf16.mxu0 0
    %806 = vmatpush1.bf16.msra.mxu0 0
    %807 = vmatprep.subr.bf16.mxu0 0
    %808 = vmatpush1.bf16.msra.mxu0 0
    %809 = vmatprep.subr.bf16.mxu0 0
    %810 = vmatpush1.bf16.msra.mxu0 0
    %811 = vmatprep.subr.bf16.mxu0 0
    %812 = vmatpush1.bf16.msra.mxu0 0
    %813 = vmatprep.subr.bf16.mxu0 0
    %814 = vmatpush1.bf16.msra.mxu0 0
    %815 = vmatprep.subr.bf16.mxu0 0
    %816 = vmatpush1.bf16.msra.mxu0 0
    %817 = vmatprep.subr.bf16.mxu0 0
    %818 = vmatpush1.bf16.msra.mxu0 0
    %819 = vmatprep.subr.bf16.mxu0 0
    %820 = vmatpush1.bf16.msra.mxu0 0
    %821 = vmatprep.mubr.bf16.mxu0 0
    %822 = vmatmul.mubr.bf16.gmra.mrb[0].mxu0 %v787
    %v823 = vpop.f32.mrb[0].mxu0
    %v824 = vadd.f32 %v773, %v823
    %v825 = vpop.f32.mrb[0].mxu0
    %v826 = vpop.f32.mrb[0].mxu0
    %v827 = vadd.f32 %v773, %v826
    %v828 = vpop.f32.mrb[0].mxu0
    %829 = vdwg.mxu0
    %v830 = vmax.f32 %v824, 0.0
    %v831 = vmax.f32 %v827, 0.0
    %v832 = vpack.c.bf16 %v831, %v830
    %v833 = vlaneseq
    %v834 = vshrl.u32 %v833, 7
    %v835 = vsub.s32 0, %v834
    %v836 = vrot.slane %v84, %v835
    %v841 = vunpack.c.l.b16 %v75
    %v842 = vunpack.c.l.b16 %v76
    %v843 = vunpack.c.l.b16 %v77
    %v844 = vunpack.c.l.b16 %v78
    %v845 = vpack.c.b16 %v842, %v841
    %v846 = vpack.c.b16 %v844, %v843
    %vm847 = vcmask 523264
    %v849 = vsel %vm847, %v832, 0
    %v852 = vsel %vm847, %v845, 0
    %v855 = vsel %vm847, %v846, 0
    %857 = vmatprep.subr.bf16.mxu0 0
    %858 = vmatpush1.bf16.xpose.msra.mxu0 %v852
    %859 = vmatprep.subr.bf16.mxu0 0
    %860 = vmatpush1.bf16.xpose.msra.mxu0 %v855
    %861 = vmatprep.subr.bf16.mxu0 0
    %862 = vmatpush1.bf16.xpose.msra.mxu0 0
    %863 = vmatprep.subr.bf16.mxu0 0
    %864 = vmatpush1.bf16.xpose.msra.mxu0 0
    %865 = vmatprep.subr.bf16.mxu0 0
    %866 = vmatpush1.bf16.xpose.msra.mxu0 0
    %867 = vmatprep.subr.bf16.mxu0 0
    %868 = vmatpush1.bf16.xpose.msra.mxu0 0
    %869 = vmatprep.subr.bf16.mxu0 0
    %870 = vmatpush1.bf16.xpose.msra.mxu0 0
    %871 = vmatprep.subr.bf16.mxu0 0
    %872 = vmatpush1.bf16.xpose.msra.mxu0 0
    %873 = vmatprep.subr.bf16.mxu0 0
    %874 = vmatpush1.bf16.xpose.msra.mxu0 0
    %875 = vmatprep.subr.bf16.mxu0 0
    %876 = vmatpush1.bf16.xpose.msra.mxu0 0
    %877 = vmatprep.subr.bf16.mxu0 0
    %878 = vmatpush1.bf16.xpose.msra.mxu0 0
    %879 = vmatprep.subr.bf16.mxu0 0
    %880 = vmatpush1.bf16.xpose.msra.mxu0 0
    %881 = vmatprep.subr.bf16.mxu0 0
    %882 = vmatpush1.bf16.xpose.msra.mxu0 0
    %883 = vmatprep.subr.bf16.mxu0 0
    %884 = vmatpush1.bf16.xpose.msra.mxu0 0
    %885 = vmatprep.subr.bf16.mxu0 0
    %886 = vmatpush1.bf16.xpose.msra.mxu0 0
    %887 = vmatprep.subr.bf16.mxu0 0
    %888 = vmatpush1.bf16.xpose.msra.mxu0 0
    %889 = vmatprep.mubr.bf16.mxu0 0
    %890 = vmatmul.mubr.bf16.gmra.mrb[0].mxu0 %v849
    %v891 = vpop.f32.mrb[0].mxu0
    %v892 = vadd.f32 %v836, %v891
    %v893 = vpop.f32.mrb[0].mxu0
    %v894 = vpop.f32.mrb[0].mxu0
    %v895 = vadd.f32 %v836, %v894
    %v896 = vpop.f32.mrb[0].mxu0
    %897 = vdwg.mxu0
    %v898 = vadd.f32 %v767, %v892
    %v899 = vadd.f32 %v768, %v895
    %v900 = vsel %vm103, %v898, 0.0
    %901 = vadd.xlane.f32.xlu0 %v900
    %v902 = vpop.xlane.xlu0 %901
    %v903 = vsel %vm103, %v899, 0.0
    %904 = vadd.xlane.f32.xlu0 %v903
    %v905 = vpop.xlane.xlu0 %904
    %v906 = vmul.f32 %v902, %v736
    %v907 = vmul.f32 %v905, %v736
    %v908 = vsub.f32 %v898, %v906
    %v909 = vsub.f32 %v899, %v907
    %v910 = vmul.f32 %v908, %v908
    %v911 = vmul.f32 %v909, %v909
    %v912 = vsel %vm103, %v910, 0.0
    %913 = vadd.xlane.f32.xlu0 %v912
    %v914 = vpop.xlane.xlu0 %913
    %v915 = vsel %vm103, %v911, 0.0
    %916 = vadd.xlane.f32.xlu0 %v915
    %v917 = vpop.xlane.xlu0 %916
    %v918 = vmul.f32 %v914, %v736
    %v919 = vmul.f32 %v917, %v736
    %v920 = vadd.f32 %v918, 1e-05
    %v921 = vadd.f32 %v919, 1e-05
    %v922 = vrsqrt.pop %v920
    %v923 = vrsqrt.pop %v921
    %v924 = vmul.f32 %v908, %v922
    %v925 = vmul.f32 %v909, %v923
    %v926 = vlaneseq
    %v927 = vshrl.u32 %v926, 7
    %v928 = vsub.s32 0, %v927
    %v929 = vrot.slane %v85, %v928
    %v930 = vmul.f32 %v924, %v929
    %v931 = vmul.f32 %v925, %v929
    %v932 = vlaneseq
    %v933 = vshrl.u32 %v932, 7
    %v934 = vsub.s32 0, %v933
    %v935 = vrot.slane %v86, %v934
    %v936 = vadd.f32 %v930, %v935
    %v937 = vadd.f32 %v931, %v935
    %938 = vst.msk [vmem:[#allocation8] sm:$0xff] %vm103, %v936
    %939 = vst.msk [vmem:[#allocation8 + $0x8] sm:$0xff] %vm103, %v937
    // Predicated region
    $region30: #{_transformer_block.1} parent=1 // pred_check
      _
    $region31: #{_transformer_block.1} parent=1 // pred_check_branch
      %941 = sbr.rel (0) target = $region33
    $region32: #{_transformer_block.1} parent=1 // pred_region
      %s943 = ssub.s32 256, 256
      %944 = vsyncadd [#allocation4], %s943
      %s945 = sshll.u32 [#allocation8], 4
      %s946 = int_to_ptr.vmem [resolvable:$true] %s945
      %951 = dma.vmem_to_hbm [thread:$0]  %s946, 256, %s4, [#allocation4], 128, 128, 8
    $region33: #{_transformer_block.1} parent=1 // pred_fallthru
      _
    // Predicated region
    $region34: #{_transformer_block.1} parent=1 // pred_check
      _
    $region35: #{_transformer_block.1} parent=1 // pred_check_branch
      %953 = sbr.rel (0) target = $region37
    $region36: #{_transformer_block.1} parent=1 // pred_region
      %954 = dma.done [#allocation4], 256
    $region37: #{_transformer_block.1} parent=1 // pred_fallthru
      _
    %955 = vsyncpa [#allocation3], 1
    %956 = vsyncpa [#allocation6], 1
    %957 = vsyncpa [#allocation4], 1

</llo_original>
